<compile_context>
chip_gen: v5e
topology: v5e:2x2
jax: 0.10.0
libtpu: 0.0.40
codegen_flags: <defaults>
</compile_context>

<pallas_src>
import functools

import jax
import jax.numpy as jnp
from jax import lax
from jax.experimental import pallas as pl
from jax.experimental.pallas import tpu as pltpu

N_EMBED = 384
BLOCK_SIZE = 256      # PyTorch module's tril buffer size (T must be <= this)
LANE = 128            # TPU lane width


def head_kernel(x_ref, w_ref, o_ref, *, head_size, v_cols):
    # x_ref: (nB, T, C)
    # w_ref: (C, v_cols + 2*H) = [ Wv.T zero-padded to v_cols | Wk.T * C**-0.5 | Wq.T ]
    # o_ref: (nB, T, v_cols)   (columns >= H are zero; wrapper slices them off)
    x = x_ref[...]                 # native dtype; MXU accumulates in f32 below
    w = w_ref[...]
    H = head_size

    # Fused QKV projection: one wide MXU matmul, f32 accumulation.
    kqv = jnp.dot(x, w, preferred_element_type=jnp.float32)     # (nB, T, v_cols + 2H)
    v = kqv[..., :v_cols]                                        # lane-aligned 128-wide slice
    k = kqv[..., v_cols:v_cols + H]                              # already scaled by C**-0.5
    q = kqv[..., v_cols + H:v_cols + 2 * H]

    # Scores k @ q^T as a contraction over H; bf16 operands, f32 accumulation.
    wei = jnp.einsum("bth,bsh->bts",
                     k.astype(jnp.bfloat16), q.astype(jnp.bfloat16),
                     preferred_element_type=jnp.float32)         # (nB, T, T)

    # Causal (lower-triangular) mask: keep col <= row, else -inf.
    T = wei.shape[1]
    row = lax.broadcasted_iota(jnp.int32, (T, T), 0)
    col = lax.broadcasted_iota(jnp.int32, (T, T), 1)
    wei = jnp.where((col <= row)[None], wei, -jnp.inf)

    # Numerically stable softmax; normalization deferred past the AV matmul.
    m = jnp.max(wei, axis=-1, keepdims=True)
    p = jnp.exp(wei - m)
    denom = jnp.sum(p, axis=-1, keepdims=True)                   # (nB, T, 1)

    # Attention-value matmul on bf16 operands; normalize the small (nB, T, v_cols) result.
    out = jnp.einsum("bts,bsh->bth",
                     p.astype(jnp.bfloat16), v.astype(jnp.bfloat16),
                     preferred_element_type=jnp.float32)         # (nB, T, v_cols)
    out = out * pl.reciprocal(denom, approx=True)                # EUP slot, tiny tensor
    o_ref[...] = out.astype(o_ref.dtype)                         # full-lane (128-wide) store


def _batch_block_and_vmem(B):
    """Per-TPU-generation batch block and scoped-VMEM limit."""
    try:
        kind = jax.devices()[0].device_kind.lower()
    except Exception:
        kind = ""
    if ("v5" in kind) or ("v6" in kind):
        max_nb, vmem_bytes = 16, 64 * 1024 * 1024     # 128 MiB VMEM parts: bigger blocks/DMAs
    else:
        max_nb, vmem_bytes = 8, 32 * 1024 * 1024      # v7x (64 MiB VMEM) / unknown: conservative
    # Keep >= 2 grid steps so v7x's two TensorCores can both get work on the parallel axis.
    cap = min(max_nb, max(1, B // 2))
    nb = 1
    for d in range(1, cap + 1):
        if B % d == 0:
            nb = d
    return nb, vmem_bytes


def head_forward(x, wk, wq, wv):
    """x: (B, T, C); wk/wq/wv: (H, C) nn.Linear weights (PyTorch layout). Returns (B, T, H)."""
    B, T, C = x.shape
    H = wk.shape[0]
    assert T <= BLOCK_SIZE

    # Lane-dense output: pad the V weight block to a multiple of 128 columns so the AV matmul
    # and the output store are full-lane.  Fold the C**-0.5 scale into the Wk columns.
    v_cols = max(LANE, ((H + LANE - 1) // LANE) * LANE)
    scale = C ** (-0.5)
    wv_pad = jnp.pad(wv.T, ((0, 0), (0, v_cols - H)))            # (C, v_cols)
    # Layout [ V(pad) | K*scale | Q ]: the V slice lands on lane-aligned vregs.
    w_fused = jnp.concatenate([wv_pad, wk.T * scale, wq.T], axis=1).astype(x.dtype)

    nB, vmem_bytes = _batch_block_and_vmem(B)
    kernel = functools.partial(head_kernel, head_size=H, v_cols=v_cols)

    out_padded = pl.pallas_call(
        kernel,
        out_shape=jax.ShapeDtypeStruct((B, T, v_cols), x.dtype),
        grid_spec=pltpu.PrefetchScalarGridSpec(
            num_scalar_prefetch=0,
            grid=(B // nB,),
            in_specs=[
                pl.BlockSpec((nB, T, C), lambda b: (b, 0, 0)),
                pl.BlockSpec((C, v_cols + 2 * H), lambda b: (0, 0)),
            ],
            out_specs=pl.BlockSpec((nB, T, v_cols), lambda b: (b, 0, 0)),
        ),
        compiler_params=pltpu.CompilerParams(
            dimension_semantics=("parallel",),
            vmem_limit_bytes=vmem_bytes,
        ),
    )(x, w_fused)
    return out_padded[..., :H]


def reference_forward(x, wk, wq, wv):
    """Pure-JAX reference mirroring the PyTorch forward (eval mode)."""
    B, T, C = x.shape
    k = x @ wk.T
    q = x @ wq.T
    v = x @ wv.T
    wei = jnp.einsum("bth,bsh->bts", k, q) * C ** (-0.5)
    mask = jnp.tril(jnp.ones((T, T), dtype=bool))
    wei = jnp.where(mask[None], wei, -jnp.inf)
    wei = jax.nn.softmax(wei, axis=-1)
    return wei @ v


if __name__ == "__main__":
    B, T, C, H = 2, 8, N_EMBED, 32
    key = jax.random.PRNGKey(0)
    kx, kk, kq, kv = jax.random.split(key, 4)

    x = jax.random.normal(kx, (B, T, C), dtype=jnp.float32)

    # nn.Linear(n_embed, head_size, bias=False) weights: (H, C); init uniform(-1/sqrt(C), 1/sqrt(C)).
    bound = 1.0 / (C ** 0.5)
    wk = jax.random.uniform(kk, (H, C), jnp.float32, -bound, bound)
    wq = jax.random.uniform(kq, (H, C), jnp.float32, -bound, bound)
    wv = jax.random.uniform(kv, (H, C), jnp.float32, -bound, bound)

    out = jax.block_until_ready(head_forward(x, wk, wq, wv))
    ref = reference_forward(x, wk, wq, wv)
    assert out.shape == (B, T, H)
    # Tolerance covers bf16 MXU operands + approx reciprocal vs. the f32 reference.
    assert jnp.allclose(out, ref, atol=2e-2, rtol=2e-2), float(jnp.max(jnp.abs(out - ref)))
    print("KERNEL_OK")
</pallas_src>

<mosaic_0001>
module attributes {stable_mosaic.version = 11 : i64} {
  func.func @head_kernel(%arg0: i32, %arg1: memref<1x8x384xf32, #tpu.memory_space<vmem>>, %arg2: memref<384x192xf32, #tpu.memory_space<vmem>>, %arg3: memref<1x8x128xf32, #tpu.memory_space<vmem>>) attributes {dimension_semantics = [#tpu.dimension_semantics<parallel>], iteration_bounds = array<i64: 2>, scalar_prefetch = 0 : i64, scratch_operands = 0 : i64, tpu.core_type = #tpu.core_type<tc>, window_params = [{transform_indices = @transform_0, window_bounds = array<i64: 1, 8, 384>}, {pipeline_mode = #tpu.pipeline_mode<synchronous>, transform_indices = @transform_1, window_bounds = array<i64: 384, 192>}, {transform_indices = @transform_2, window_bounds = array<i64: 1, 8, 128>}]} {
    %c0 = arith.constant 0 : index
    %c0_0 = arith.constant 0 : index
    %c0_1 = arith.constant 0 : index
    %0 = vector.load %arg1[%c0, %c0_0, %c0_1] : memref<1x8x384xf32, #tpu.memory_space<vmem>>, vector<1x8x384xf32>
    %c0_2 = arith.constant 0 : index
    %c0_3 = arith.constant 0 : index
    %1 = vector.load %arg2[%c0_2, %c0_3] : memref<384x192xf32, #tpu.memory_space<vmem>>, vector<384x192xf32>
    %cst = arith.constant dense<0.000000e+00> : vector<1x8x192xf32>
    %2 = tpu.matmul %0, %1, %cst {dimension_numbers = #tpu.dot_dimension_numbers<[2], [0], [0, 1], [1], [0, 0, 0, 1, 1, 1], [], []>} : vector<1x8x384xf32>, vector<384x192xf32>, vector<1x8x192xf32> -> vector<1x8x192xf32>
    %3 = vector.extract_strided_slice %2 {offsets = [0, 0, 0], sizes = [1, 8, 128], strides = [1, 1, 1]} : vector<1x8x192xf32> to vector<1x8x128xf32>
    %4 = vector.extract_strided_slice %2 {offsets = [0, 0, 128], sizes = [1, 8, 32], strides = [1, 1, 1]} : vector<1x8x192xf32> to vector<1x8x32xf32>
    %5 = vector.extract_strided_slice %2 {offsets = [0, 0, 160], sizes = [1, 8, 32], strides = [1, 1, 1]} : vector<1x8x192xf32> to vector<1x8x32xf32>
    %6 = arith.truncf %4 : vector<1x8x32xf32> to vector<1x8x32xbf16>
    %7 = arith.truncf %5 : vector<1x8x32xf32> to vector<1x8x32xbf16>
    "tpu.trace_start"() <{level = 10 : i32, message = "bth,bsh->bts"}> : () -> ()
    %cst_4 = arith.constant dense<0.000000e+00> : vector<1x8x8xf32>
    %8 = tpu.matmul %6, %7, %cst_4 {dimension_numbers = #tpu.dot_dimension_numbers<[2], [2], [1], [1], [0, 0, 0, 1, 1, 1], [0], [0]>} : vector<1x8x32xbf16>, vector<1x8x32xbf16>, vector<1x8x8xf32> -> vector<1x8x8xf32>
    "tpu.trace_stop"() : () -> ()
    %9 = tpu.iota {dimensions = array<i32: 0>} : vector<8x8xi32>
    %10 = tpu.iota {dimensions = array<i32: 1>} : vector<8x8xi32>
    %11 = arith.cmpi sle, %10, %9 : vector<8x8xi32>
    %12 = vector.shape_cast %11 : vector<8x8xi1> to vector<1x8x8xi1>
    %cst_5 = arith.constant 0xFF800000 : f32
    %13 = vector.broadcast %cst_5 : f32 to vector<1x8x8xf32>
    %14 = arith.select %12, %8, %13 : vector<1x8x8xi1>, vector<1x8x8xf32>
    %cst_6 = arith.constant dense<0xFF800000> : vector<1x8xf32>
    %15 = vector.multi_reduction <maximumf>, %14, %cst_6 [2] : vector<1x8x8xf32> to vector<1x8xf32>
    %16 = vector.shape_cast %15 : vector<1x8xf32> to vector<1x8x1xf32>
    %17 = vector.broadcast %16 : vector<1x8x1xf32> to vector<1x8x8xf32>
    %18 = arith.subf %14, %17 : vector<1x8x8xf32>
    %19 = math.exp %18 : vector<1x8x8xf32>
    %cst_7 = arith.constant dense<0.000000e+00> : vector<1x8xf32>
    %20 = vector.multi_reduction <add>, %19, %cst_7 [2] : vector<1x8x8xf32> to vector<1x8xf32>
    %21 = vector.shape_cast %20 : vector<1x8xf32> to vector<1x8x1xf32>
    %22 = arith.truncf %19 : vector<1x8x8xf32> to vector<1x8x8xbf16>
    %23 = arith.truncf %3 : vector<1x8x128xf32> to vector<1x8x128xbf16>
    "tpu.trace_start"() <{level = 10 : i32, message = "bts,bsh->bth"}> : () -> ()
    %cst_8 = arith.constant dense<0.000000e+00> : vector<1x8x128xf32>
    %24 = tpu.matmul %22, %23, %cst_8 {dimension_numbers = #tpu.dot_dimension_numbers<[2], [1], [1], [2], [0, 0, 0, 1, 1, 2], [0], [0]>} : vector<1x8x8xbf16>, vector<1x8x128xbf16>, vector<1x8x128xf32> -> vector<1x8x128xf32>
    "tpu.trace_stop"() : () -> ()
    %25 = tpu.reciprocal %21 {approx = true} : vector<1x8x1xf32> -> vector<1x8x1xf32>
    %26 = vector.broadcast %25 : vector<1x8x1xf32> to vector<1x8x128xf32>
    %27 = arith.mulf %24, %26 : vector<1x8x128xf32>
    %c0_9 = arith.constant 0 : index
    %c0_10 = arith.constant 0 : index
    %c0_11 = arith.constant 0 : index
    %28 = vector.load %arg3[%c0_9, %c0_10, %c0_11] : memref<1x8x128xf32, #tpu.memory_space<vmem>>, vector<1x8x128xf32>
    tpu.vector_store %arg3[%c0_9, %c0_10, %c0_11], %27 {strides = array<i32>} : memref<1x8x128xf32, #tpu.memory_space<vmem>>, vector<1x8x128xf32>,
    return
  }
  func.func @transform_0(%arg0: i32) -> (i32, i32, i32) {
    %c0_i32 = arith.constant 0 : i32
    %c0_i32_0 = arith.constant 0 : i32
    %c0_i32_1 = arith.constant 0 : i32
    return %arg0, %c0_i32, %c0_i32_0 : i32, i32, i32
  }
  func.func @transform_1(%arg0: i32) -> (i32, i32) {
    %c0_i32 = arith.constant 0 : i32
    %c0_i32_0 = arith.constant 0 : i32
    %c0_i32_1 = arith.constant 0 : i32
    return %c0_i32, %c0_i32_0 : i32, i32
  }
  func.func @transform_2(%arg0: i32) -> (i32, i32, i32) {
    %c0_i32 = arith.constant 0 : i32
    %c0_i32_0 = arith.constant 0 : i32
    %c0_i32_1 = arith.constant 0 : i32
    return %arg0, %c0_i32, %c0_i32_0 : i32, i32, i32
  }
}

</mosaic_0001>

<llo_original>
// kernel: tpu_custom_call.1
$region0: #{tpu_custom_call.1}
  #allocation0 [shape = 'u32[]', space=smem, size = 0x4, offset = 0x4, fixed_abs, tag = 'smem constant byte address 0x4 - core index']
  #allocation1 [shape = 'u32[72,128]{1,0:T(1,128)}', space=vmem, size = 0x9000, scoped, tag = 'internal scratch']
  %s0 = inlined_call_operand.vmem [shape: f32[2,8,384], index: 0, kind: input, shape index: {}]
  %s1 = inlined_call_operand.vmem [shape: f32[384,192], index: 1, kind: input, shape index: {}]
  %s2 = inlined_call_operand.hbm [shape: f32[2,8,128], index: 2, kind: output, shape index: {}]
  %s3 = sld [smem:[#allocation0]]
  $region41: #{tpu_custom_call.1} parent=0
    _
  %s5 = ssub.s32 1, %s3
  %s6 = scalar_select 0, %s5, %s3
  $region1: #{tpu_custom_call.1} parent=0
    #allocation2 [shape = 'u8[8192]{0}', space=vmem, size = 0x2000, scoped, tag = 'output window, operand 0']
    #allocation3 [shape = 's32[2]{0}', space=sflag, size = 0x8, scoped, tag = 'scoped memory for tpu_custom_call.1']
    %7 = vsyncpa [#allocation3], 0
    %s8 = scalar_lea.sflag [#allocation3], 1
    %9 = vsyncpa %s8, 0
    loop: start=0, step=1, limit=4
    $region2: #{tpu_custom_call.1} parent=1 // loop_pre_header
      _
    $region3: #{tpu_custom_call.1} parent=1 // loop_header
      %s11 = sphi 0, %s15
      %p12 = scmp.ge.s32.totalorder %s11, 4
      %s21 = sphi 0, %s23
      %s24 = sphi 0, %s21
      %s25 = sphi 0, %s24
      %s41 = sphi 0, %s25
      %s45 = sphi 0, %s45
      %s47 = sphi 0, %s45
      %s48 = sphi 0, %s47
      %s62 = sphi 0, %s48
      %s68 = sphi 0, %s70
      %s71 = sphi 0, %s68
      %s72 = sphi 0, %s71
      %s88 = sphi 0, %s72
    $region4: #{tpu_custom_call.1} parent=1 // loop_header_branch
      %14 = sbr.rel (%p12) target = $region8
    $region5: #{tpu_custom_call.1} parent=1 // loop_body
      %s16 = ssub.s32 %s11, 1
      %s17 = ssub.s32 %s11, 2
      %s18 = sadd.s32 %s11, 1
      %s19 = ssub.s32 %s11, %s18
      %p20 = scmp.eq.s32.totalorder %s19, 0
      %s22 = sadd.s32 %s21, 1
      %s23 = scalar_select %p20, %s21, %s22
      %p26 = pneg %p20
      %p27 = scmp.eq.s32.totalorder %s11, 1
      %p28 = por %p26, %p27
      %p29 = scmp.ne.s32.totalorder %s21, %s24
      %p30 = scmp.eq.s32.totalorder %s11, 0
      %p31 = por %p29, %p30
      %p32 = scmp.ne.s32.totalorder %s21, %s24
      %p33 = scmp.eq.s32.totalorder %s16, 1
      %p34 = por %p32, %p33
      %p35 = scmp.ne.s32.totalorder %s24, %s25
      %p36 = scmp.eq.s32.totalorder %s16, 0
      %p37 = por %p35, %p36
      %p38 = scmp.ne.s32.totalorder %s24, %s25
      %p39 = scmp.eq.s32.totalorder %s17, 1
      %p40 = por %p38, %p39
      %p42 = scmp.ne.s32.totalorder %s25, %s41
      %p43 = scmp.eq.s32.totalorder %s17, 0
      %p44 = por %p42, %p43
      %s46 = sadd.s32 %s45, 1
      %p49 = scmp.eq.s32.totalorder %s11, 1
      %p50 = scmp.ne.s32.totalorder %s45, %s47
      %p51 = scmp.eq.s32.totalorder %s11, 0
      %p52 = por %p50, %p51
      %p53 = scmp.ne.s32.totalorder %s45, %s47
      %p54 = scmp.eq.s32.totalorder %s16, 1
      %p55 = por %p53, %p54
      %p56 = scmp.ne.s32.totalorder %s47, %s48
      %p57 = scmp.eq.s32.totalorder %s16, 0
      %p58 = por %p56, %p57
      %p59 = scmp.ne.s32.totalorder %s47, %s48
      %p60 = scmp.eq.s32.totalorder %s17, 1
      %p61 = por %p59, %p60
      %p63 = scmp.ne.s32.totalorder %s48, %s62
      %p64 = scmp.eq.s32.totalorder %s17, 0
      %p65 = por %p63, %p64
      %s66 = ssub.s32 %s11, %s18
      %p67 = scmp.eq.s32.totalorder %s66, 0
      %s69 = sadd.s32 %s68, 1
      %s70 = scalar_select %p67, %s68, %s69
      %p73 = pneg %p67
      %p74 = scmp.eq.s32.totalorder %s11, 1
      %p75 = por %p73, %p74
      %p76 = scmp.ne.s32.totalorder %s68, %s71
      %p77 = scmp.eq.s32.totalorder %s11, 0
      %p78 = por %p76, %p77
      %p79 = scmp.ne.s32.totalorder %s68, %s71
      %p80 = scmp.eq.s32.totalorder %s16, 1
      %p81 = por %p79, %p80
      %p82 = scmp.ne.s32.totalorder %s71, %s72
      %p83 = scmp.eq.s32.totalorder %s16, 0
      %p84 = por %p82, %p83
      %p85 = scmp.ne.s32.totalorder %s71, %s72
      %p86 = scmp.eq.s32.totalorder %s17, 1
      %p87 = por %p85, %p86
      %p89 = scmp.ne.s32.totalorder %s72, %s88
      %p90 = scmp.eq.s32.totalorder %s17, 0
      %p91 = por %p89, %p90
      %p92 = scmp.le.s32.totalorder 1, %s11
      %p93 = scmp.lt.s32.totalorder %s11, 3
      %p94 = pnand %p92, %p93
      %p95 = pneg %p94
      // Predicated region
      $region9: #{tpu_custom_call.1} parent=5 // pred_check
        _
      $region10: #{tpu_custom_call.1} parent=5 // pred_check_branch
        %97 = sbr.rel (%p94) target = $region12
      $region11: #{tpu_custom_call.1} parent=5 // pred_region
        %s98 = ssub.s32 %s11, 1
        // Predicated region
        $region13: #{tpu_custom_call.1} parent=11 // pred_check
          %p99 = pneg %p58
        $region14: #{tpu_custom_call.1} parent=11 // pred_check_branch
          %101 = sbr.rel (%p99) target = $region16
        $region15: #{tpu_custom_call.1} parent=11 // pred_region
          _
        $region16: #{tpu_custom_call.1} parent=11 // pred_fallthru
          _
      $region12: #{tpu_custom_call.1} parent=5 // pred_fallthru
        _
      %p102 = scmp.lt.s32.totalorder %s11, 2
      // Predicated region
      $region17: #{tpu_custom_call.1} parent=5 // pred_check
        %p103 = pneg %p102
      $region18: #{tpu_custom_call.1} parent=5 // pred_check_branch
        %105 = sbr.rel (%p103) target = $region20
      $region19: #{tpu_custom_call.1} parent=5 // pred_region
        // Predicated region
        $region21: #{tpu_custom_call.1} parent=19 // pred_check
          %p106 = pneg %p31
        $region22: #{tpu_custom_call.1} parent=19 // pred_check_branch
          %108 = sbr.rel (%p106) target = $region24
        $region23: #{tpu_custom_call.1} parent=19 // pred_region
          %p109 = scmp.lt.s32.totalorder %s11, 1
          %s110 = scalar_select %p109, %s11, 1
          %s111 = smul.addr %s110, 3
          %s112 = smul.addr %s111, 8
          %s113 = scalar_lea.vmem %s0, %s112
        $region24: #{tpu_custom_call.1} parent=19 // pred_fallthru
          _
      $region20: #{tpu_custom_call.1} parent=5 // pred_fallthru
        _
      %p114 = scmp.le.s32.totalorder 1, %s11
      %p115 = scmp.lt.s32.totalorder %s11, 3
      %p116 = pnand %p114, %p115
      %p117 = pneg %p116
      // Predicated region
      $region25: #{tpu_custom_call.1} parent=5 // pred_check
        _
      $region26: #{tpu_custom_call.1} parent=5 // pred_check_branch
        %119 = sbr.rel (%p116) target = $region28
      $region27: #{tpu_custom_call.1} parent=5 // pred_region
        %s120 = ssub.s32 %s11, 1
        %p121 = scmp.lt.s32.totalorder %s16, 1
        %s122 = scalar_select %p121, %s16, 1
        %s123 = smul.addr %s122, 3
        %s124 = smul.addr %s123, 8
        %s125 = scalar_lea.vmem %s0, %s124
        %p126 = pneg %p37
        %p127 = pneg %p34
        %p128 = pneg %p58
        %p129 = pneg %p55
        %p130 = pneg %p84
        %p131 = pneg %p81
        %s132 = sand.u32 %s71, 1
        %s133 = scalar_lea.sflag [#allocation3], %s132
        %s134 = sand.u32 %s71, 1
        %s135 = smul.addr %s134, 8
        %s136 = scalar_lea.vmem [#allocation2], %s135
        %p137 = scmp.lt.s32.totalorder %s16, 1
        %s138 = scalar_select %p137, %s16, 1
        %s139 = smul.addr %s138, 3
        %s140 = smul.addr %s139, 8
        %s141 = scalar_lea.vmem %s0, %s140
        %v143 = vld [vmem:[%s141] sm:$0xff]
        %v144 = vld [vmem:[%s141 + $0x8] sm:$0xff]
        %v145 = vld [vmem:[%s141 + $0x10] sm:$0xff]
        %v146 = vld [vmem:[%s1] sm:$0xff]
        %v147 = vld [vmem:[%s1 + $0x8] sm:$0xff]
        %v148 = vld [vmem:[%s1 + $0x10] sm:$0xff]
        %v149 = vld [vmem:[%s1 + $0x18] sm:$0xff]
        %v150 = vld [vmem:[%s1 + $0x20] sm:$0xff]
        %v151 = vld [vmem:[%s1 + $0x28] sm:$0xff]
        %v152 = vld [vmem:[%s1 + $0x30] sm:$0xff]
        %v153 = vld [vmem:[%s1 + $0x38] sm:$0xff]
        %v154 = vld [vmem:[%s1 + $0x40] sm:$0xff]
        %v155 = vld [vmem:[%s1 + $0x48] sm:$0xff]
        %v156 = vld [vmem:[%s1 + $0x50] sm:$0xff]
        %v157 = vld [vmem:[%s1 + $0x58] sm:$0xff]
        %v158 = vld [vmem:[%s1 + $0x60] sm:$0xff]
        %v159 = vld [vmem:[%s1 + $0x68] sm:$0xff]
        %v160 = vld [vmem:[%s1 + $0x70] sm:$0xff]
        %v161 = vld [vmem:[%s1 + $0x78] sm:$0xff]
        %v162 = vld [vmem:[%s1 + $0x80] sm:$0xff]
        %v163 = vld [vmem:[%s1 + $0x88] sm:$0xff]
        %v164 = vld [vmem:[%s1 + $0x90] sm:$0xff]
        %v165 = vld [vmem:[%s1 + $0x98] sm:$0xff]
        %v166 = vld [vmem:[%s1 + $0xa0] sm:$0xff]
        %v167 = vld [vmem:[%s1 + $0xa8] sm:$0xff]
        %v168 = vld [vmem:[%s1 + $0xb0] sm:$0xff]
        %v169 = vld [vmem:[%s1 + $0xb8] sm:$0xff]
        %v170 = vld [vmem:[%s1 + $0xc0] sm:$0xff]
        %v171 = vld [vmem:[%s1 + $0xc8] sm:$0xff]
        %v172 = vld [vmem:[%s1 + $0xd0] sm:$0xff]
        %v173 = vld [vmem:[%s1 + $0xd8] sm:$0xff]
        %v174 = vld [vmem:[%s1 + $0xe0] sm:$0xff]
        %v175 = vld [vmem:[%s1 + $0xe8] sm:$0xff]
        %v176 = vld [vmem:[%s1 + $0xf0] sm:$0xff]
        %v177 = vld [vmem:[%s1 + $0xf8] sm:$0xff]
        %v178 = vld [vmem:[%s1 + $0x100] sm:$0xff]
        %v179 = vld [vmem:[%s1 + $0x108] sm:$0xff]
        %v180 = vld [vmem:[%s1 + $0x110] sm:$0xff]
        %v181 = vld [vmem:[%s1 + $0x118] sm:$0xff]
        %v182 = vld [vmem:[%s1 + $0x120] sm:$0xff]
        %v183 = vld [vmem:[%s1 + $0x128] sm:$0xff]
        %v184 = vld [vmem:[%s1 + $0x130] sm:$0xff]
        %v185 = vld [vmem:[%s1 + $0x138] sm:$0xff]
        %v186 = vld [vmem:[%s1 + $0x140] sm:$0xff]
        %v187 = vld [vmem:[%s1 + $0x148] sm:$0xff]
        %v188 = vld [vmem:[%s1 + $0x150] sm:$0xff]
        %v189 = vld [vmem:[%s1 + $0x158] sm:$0xff]
        %v190 = vld [vmem:[%s1 + $0x160] sm:$0xff]
        %v191 = vld [vmem:[%s1 + $0x168] sm:$0xff]
        %v192 = vld [vmem:[%s1 + $0x170] sm:$0xff]
        %v193 = vld [vmem:[%s1 + $0x178] sm:$0xff]
        %v194 = vld [vmem:[%s1 + $0x180] sm:$0xff]
        %v195 = vld [vmem:[%s1 + $0x188] sm:$0xff]
        %v196 = vld [vmem:[%s1 + $0x190] sm:$0xff]
        %v197 = vld [vmem:[%s1 + $0x198] sm:$0xff]
        %v198 = vld [vmem:[%s1 + $0x1a0] sm:$0xff]
        %v199 = vld [vmem:[%s1 + $0x1a8] sm:$0xff]
        %v200 = vld [vmem:[%s1 + $0x1b0] sm:$0xff]
        %v201 = vld [vmem:[%s1 + $0x1b8] sm:$0xff]
        %v202 = vld [vmem:[%s1 + $0x1c0] sm:$0xff]
        %v203 = vld [vmem:[%s1 + $0x1c8] sm:$0xff]
        %v204 = vld [vmem:[%s1 + $0x1d0] sm:$0xff]
        %v205 = vld [vmem:[%s1 + $0x1d8] sm:$0xff]
        %v206 = vld [vmem:[%s1 + $0x1e0] sm:$0xff]
        %v207 = vld [vmem:[%s1 + $0x1e8] sm:$0xff]
        %v208 = vld [vmem:[%s1 + $0x1f0] sm:$0xff]
        %v209 = vld [vmem:[%s1 + $0x1f8] sm:$0xff]
        %v210 = vld [vmem:[%s1 + $0x200] sm:$0xff]
        %v211 = vld [vmem:[%s1 + $0x208] sm:$0xff]
        %v212 = vld [vmem:[%s1 + $0x210] sm:$0xff]
        %v213 = vld [vmem:[%s1 + $0x218] sm:$0xff]
        %v214 = vld [vmem:[%s1 + $0x220] sm:$0xff]
        %v215 = vld [vmem:[%s1 + $0x228] sm:$0xff]
        %v216 = vld [vmem:[%s1 + $0x230] sm:$0xff]
        %v217 = vld [vmem:[%s1 + $0x238] sm:$0xff]
        %v218 = vld [vmem:[%s1 + $0x240] sm:$0xff]
        %v219 = vld [vmem:[%s1 + $0x248] sm:$0xff]
        %v220 = vld [vmem:[%s1 + $0x250] sm:$0xff]
        %v221 = vld [vmem:[%s1 + $0x258] sm:$0xff]
        %v222 = vld [vmem:[%s1 + $0x260] sm:$0xff]
        %v223 = vld [vmem:[%s1 + $0x268] sm:$0xff]
        %v224 = vld [vmem:[%s1 + $0x270] sm:$0xff]
        %v225 = vld [vmem:[%s1 + $0x278] sm:$0xff]
        %v226 = vld [vmem:[%s1 + $0x280] sm:$0xff]
        %v227 = vld [vmem:[%s1 + $0x288] sm:$0xff]
        %v228 = vld [vmem:[%s1 + $0x290] sm:$0xff]
        %v229 = vld [vmem:[%s1 + $0x298] sm:$0xff]
        %v230 = vld [vmem:[%s1 + $0x2a0] sm:$0xff]
        %v231 = vld [vmem:[%s1 + $0x2a8] sm:$0xff]
        %v232 = vld [vmem:[%s1 + $0x2b0] sm:$0xff]
        %v233 = vld [vmem:[%s1 + $0x2b8] sm:$0xff]
        %v234 = vld [vmem:[%s1 + $0x2c0] sm:$0xff]
        %v235 = vld [vmem:[%s1 + $0x2c8] sm:$0xff]
        %v236 = vld [vmem:[%s1 + $0x2d0] sm:$0xff]
        %v237 = vld [vmem:[%s1 + $0x2d8] sm:$0xff]
        %v238 = vld [vmem:[%s1 + $0x2e0] sm:$0xff]
        %v239 = vld [vmem:[%s1 + $0x2e8] sm:$0xff]
        %v240 = vld [vmem:[%s1 + $0x2f0] sm:$0xff]
        %v241 = vld [vmem:[%s1 + $0x2f8] sm:$0xff]
        %242 = vmatpush.msra.mxu0 %v176
        %243 = vmatpush.msra.mxu0 %v174
        %244 = vmatpush.msra.mxu0 %v172
        %245 = vmatpush.msra.mxu0 %v170
        %246 = vmatpush.msra.mxu0 %v168
        %247 = vmatpush.msra.mxu0 %v166
        %248 = vmatpush.msra.mxu0 %v164
        %249 = vmatpush.msra.mxu0 %v162
        %250 = vmatpush.msra.mxu0 %v160
        %251 = vmatpush.msra.mxu0 %v158
        %252 = vmatpush.msra.mxu0 %v156
        %253 = vmatpush.msra.mxu0 %v154
        %254 = vmatpush.msra.mxu0 %v152
        %255 = vmatpush.msra.mxu0 %v150
        %256 = vmatpush.msra.mxu0 %v148
        %257 = vmatpush.msra.mxu0 %v146
        %258 = vmatmul.f32.gmra.mxu0 %v143
        %v259 = vpop.f32.mrf.mxu0
        %v260 = vadd.f32 0.0, %v259
        %261 = vdwg.mxu0
        %262 = vmatpush.msra.mxu0 %v208
        %263 = vmatpush.msra.mxu0 %v206
        %264 = vmatpush.msra.mxu0 %v204
        %265 = vmatpush.msra.mxu0 %v202
        %266 = vmatpush.msra.mxu0 %v200
        %267 = vmatpush.msra.mxu0 %v198
        %268 = vmatpush.msra.mxu0 %v196
        %269 = vmatpush.msra.mxu0 %v194
        %270 = vmatpush.msra.mxu0 %v192
        %271 = vmatpush.msra.mxu0 %v190
        %272 = vmatpush.msra.mxu0 %v188
        %273 = vmatpush.msra.mxu0 %v186
        %274 = vmatpush.msra.mxu0 %v184
        %275 = vmatpush.msra.mxu0 %v182
        %276 = vmatpush.msra.mxu0 %v180
        %277 = vmatpush.msra.mxu0 %v178
        %278 = vmatmul.f32.gmra.mxu0 %v144
        %v279 = vpop.f32.mrf.mxu0
        %v280 = vadd.f32 %v260, %v279
        %281 = vdwg.mxu0
        %282 = vmatpush.msra.mxu0 %v240
        %283 = vmatpush.msra.mxu0 %v238
        %284 = vmatpush.msra.mxu0 %v236
        %285 = vmatpush.msra.mxu0 %v234
        %286 = vmatpush.msra.mxu0 %v232
        %287 = vmatpush.msra.mxu0 %v230
        %288 = vmatpush.msra.mxu0 %v228
        %289 = vmatpush.msra.mxu0 %v226
        %290 = vmatpush.msra.mxu0 %v224
        %291 = vmatpush.msra.mxu0 %v222
        %292 = vmatpush.msra.mxu0 %v220
        %293 = vmatpush.msra.mxu0 %v218
        %294 = vmatpush.msra.mxu0 %v216
        %295 = vmatpush.msra.mxu0 %v214
        %296 = vmatpush.msra.mxu0 %v212
        %297 = vmatpush.msra.mxu0 %v210
        %298 = vmatmul.f32.gmra.mxu0 %v145
        %v299 = vpop.f32.mrf.mxu0
        %v300 = vadd.f32 %v280, %v299
        %301 = vdwg.mxu0
        %302 = vmatpush.msra.mxu0 %v177
        %303 = vmatpush.msra.mxu0 %v175
        %304 = vmatpush.msra.mxu0 %v173
        %305 = vmatpush.msra.mxu0 %v171
        %306 = vmatpush.msra.mxu0 %v169
        %307 = vmatpush.msra.mxu0 %v167
        %308 = vmatpush.msra.mxu0 %v165
        %309 = vmatpush.msra.mxu0 %v163
        %310 = vmatpush.msra.mxu0 %v161
        %311 = vmatpush.msra.mxu0 %v159
        %312 = vmatpush.msra.mxu0 %v157
        %313 = vmatpush.msra.mxu0 %v155
        %314 = vmatpush.msra.mxu0 %v153
        %315 = vmatpush.msra.mxu0 %v151
        %316 = vmatpush.msra.mxu0 %v149
        %317 = vmatpush.msra.mxu0 %v147
        %318 = vmatmul.f32.gmra.mxu0 %v143
        %v319 = vpop.f32.mrf.mxu0
        %v320 = vadd.f32 0.0, %v319
        %321 = vdwg.mxu0
        %322 = vmatpush.msra.mxu0 %v209
        %323 = vmatpush.msra.mxu0 %v207
        %324 = vmatpush.msra.mxu0 %v205
        %325 = vmatpush.msra.mxu0 %v203
        %326 = vmatpush.msra.mxu0 %v201
        %327 = vmatpush.msra.mxu0 %v199
        %328 = vmatpush.msra.mxu0 %v197
        %329 = vmatpush.msra.mxu0 %v195
        %330 = vmatpush.msra.mxu0 %v193
        %331 = vmatpush.msra.mxu0 %v191
        %332 = vmatpush.msra.mxu0 %v189
        %333 = vmatpush.msra.mxu0 %v187
        %334 = vmatpush.msra.mxu0 %v185
        %335 = vmatpush.msra.mxu0 %v183
        %336 = vmatpush.msra.mxu0 %v181
        %337 = vmatpush.msra.mxu0 %v179
        %338 = vmatmul.f32.gmra.mxu0 %v144
        %v339 = vpop.f32.mrf.mxu0
        %v340 = vadd.f32 %v320, %v339
        %341 = vdwg.mxu0
        %342 = vmatpush.msra.mxu0 %v241
        %343 = vmatpush.msra.mxu0 %v239
        %344 = vmatpush.msra.mxu0 %v237
        %345 = vmatpush.msra.mxu0 %v235
        %346 = vmatpush.msra.mxu0 %v233
        %347 = vmatpush.msra.mxu0 %v231
        %348 = vmatpush.msra.mxu0 %v229
        %349 = vmatpush.msra.mxu0 %v227
        %350 = vmatpush.msra.mxu0 %v225
        %351 = vmatpush.msra.mxu0 %v223
        %352 = vmatpush.msra.mxu0 %v221
        %353 = vmatpush.msra.mxu0 %v219
        %354 = vmatpush.msra.mxu0 %v217
        %355 = vmatpush.msra.mxu0 %v215
        %356 = vmatpush.msra.mxu0 %v213
        %357 = vmatpush.msra.mxu0 %v211
        %358 = vmatmul.f32.gmra.mxu0 %v145
        %v359 = vpop.f32.mrf.mxu0
        %v360 = vadd.f32 %v340, %v359
        %361 = vdwg.mxu0
        %v362 = vpack.c.bf16 %v360, %v360
        %v364 = vunpack.c.l.b16 %v362
        %v365 = vpack.c.b16 %v364, %v364
        %366 = vrot.lane.b32.xlu0 %v365, 96
        %v367 = vpop.permute.xlu0 %366
        %vm368 = vcmask 261120
        %v370 = vsel %vm368, %v362, 0
        %v373 = vsel %vm368, %v367, 0
        %375 = vmatpush.bf16.xpose.msra.mxu0 0
        %376 = vmatpush.bf16.xpose.msra.mxu0 0
        %377 = vmatpush.bf16.xpose.msra.mxu0 0
        %378 = vmatpush.bf16.xpose.msra.mxu0 0
        %379 = vmatpush.bf16.xpose.msra.mxu0 0
        %380 = vmatpush.bf16.xpose.msra.mxu0 0
        %381 = vmatpush.bf16.xpose.msra.mxu0 0
        %382 = vmatpush.bf16.xpose.msra.mxu0 %v373
        %383 = vmatmul.bf16.gmra.mxu0 %v370
        %v384 = vpop.f32.mrf.mxu0
        %v385 = vadd.f32 0.0, %v384
        %v386 = vpop.f32.mrf.mxu0
        %387 = vdwg.mxu0
        %v388 = vlaneseq
        %v389 = vshrl.u32 %v388, 7
        %v390 = vlaneseq
        %v391 = vand.u32 %v390, 127
        %vm392 = vcmp.le.s32.totalorder %v391, %v389
        %v393 = vsel %vm392, %v385, -inf
        %vm394 = vcmask 64512
        %v395 = vsel %vm394, %v393, -inf
        %396 = vmax.xlane.f32.xlu0 %v395
        %v397 = vpop.xlane.xlu0 %396
        %v398 = vsub.f32 %v393, %v397
        %v399 = vmul.f32 %v398, 1.442695
        %v400 = vpow.pop %v399
        %v401 = vsel %vm394, %v400, 0.0
        %402 = vadd.xlane.f32.xlu0 %v401
        %v403 = vpop.xlane.xlu0 %402
        %v404 = vpack.c.bf16 %v400, %v400
        %v405 = vpack.c.bf16 %v300, %v300
        %v407 = vsel %vm394, %v404, 0
        %vm409 = vcmask 1043456
        %v411 = vsel %vm409, %v405, 0
        %413 = vmatpush.bf16.msra.mxu0 0
        %414 = vmatpush.bf16.msra.mxu0 0
        %415 = vmatpush.bf16.msra.mxu0 0
        %416 = vmatpush.bf16.msra.mxu0 0
        %417 = vmatpush.bf16.msra.mxu0 0
        %418 = vmatpush.bf16.msra.mxu0 0
        %419 = vmatpush.bf16.msra.mxu0 0
        %420 = vmatpush.bf16.msra.mxu0 %v411
        %421 = vmatmul.bf16.gmra.mxu0 %v407
        %v422 = vpop.f32.mrf.mxu0
        %v423 = vadd.f32 0.0, %v422
        %v424 = vpop.f32.mrf.mxu0
        %425 = vdwg.mxu0
        %v426 = vrcp.pop %v403
        %v427 = vmul.f32 %v423, %v426
        %428 = vst [vmem:[%s136] sm:$0xff] %v427
        %s429 = sand.u32 %s71, 1
        %s430 = scalar_lea.sflag [#allocation3], %s429
        %s431 = sand.u32 %s71, 1
        %s432 = smul.addr %s431, 8
        %s433 = scalar_lea.vmem [#allocation2], %s432
        // Predicated region
        $region29: #{tpu_custom_call.1} parent=27 // pred_check
          %p434 = pneg %p81
        $region30: #{tpu_custom_call.1} parent=27 // pred_check_branch
          %436 = sbr.rel (%p434) target = $region32
        $region31: #{tpu_custom_call.1} parent=27 // pred_region
          %438 = vsyncadd %s430, 0
          %s439 = smul.addr %s16, 8
          %s440 = scalar_lea.hbm %s2, %s439
          %s442 = sshll.u32 %s433, 4
          %s443 = int_to_ptr.vmem [resolvable:$true] %s442
          %s444 = sshll.u32 %s440, 4
          %s445 = int_to_ptr.hbm [resolvable:$true] %s444
          %447 = dma.vmem_to_hbm [thread:$0]  %s443, 128, %s445, %s430
        $region32: #{tpu_custom_call.1} parent=27 // pred_fallthru
          _
      $region28: #{tpu_custom_call.1} parent=5 // pred_fallthru
        _
      %p448 = scmp.le.s32.totalorder 2, %s11
      // Predicated region
      $region33: #{tpu_custom_call.1} parent=5 // pred_check
        %p449 = pneg %p448
      $region34: #{tpu_custom_call.1} parent=5 // pred_check_branch
        %451 = sbr.rel (%p449) target = $region36
      $region35: #{tpu_custom_call.1} parent=5 // pred_region
        %s452 = ssub.s32 %s11, 2
        // Predicated region
        $region37: #{tpu_custom_call.1} parent=35 // pred_check
          %p453 = pneg %p87
        $region38: #{tpu_custom_call.1} parent=35 // pred_check_branch
          %455 = sbr.rel (%p453) target = $region40
        $region39: #{tpu_custom_call.1} parent=35 // pred_region
          %s456 = sand.u32 %s72, 1
          %s457 = scalar_lea.sflag [#allocation3], %s456
          %s458 = sand.u32 %s72, 1
          %s459 = smul.addr %s458, 8
          %s460 = scalar_lea.vmem [#allocation2], %s459
          %462 = dma.done %s457, 128
        $region40: #{tpu_custom_call.1} parent=35 // pred_fallthru
          _
      $region36: #{tpu_custom_call.1} parent=5 // pred_fallthru
        _
    $region6: #{tpu_custom_call.1} parent=1 // loop_footer
      %s15 = sadd.s32 1, %s11
    $region7: #{tpu_custom_call.1} parent=1 // loop_footer_branch
      %10 = sbr.rel target = $region3
    $region8: #{tpu_custom_call.1} parent=1 // loop_exit
      _
    %463 = vsyncpa [#allocation3], 1
    %s464 = scalar_lea.sflag [#allocation3], 1
    %465 = vsyncpa %s464, 1

</llo_original>
